<compile_context>
chip_gen: v6e
topology: v6e:2x2x1
jax: 0.10.0
libtpu: 0.0.40
codegen_flags: <defaults>
</compile_context>

<pallas_src>
import math

import jax
import jax.numpy as jnp
from jax.experimental import pallas as pl
from jax.experimental.pallas import tpu as pltpu


def make_pe(d_model: int, height: int, width: int) -> jnp.ndarray:
    """Build the PE buffer exactly as the PyTorch __init__ does.

    Even channels: sin(h*div) + sin(w*div); odd channels: cos(h*div) + cos(w*div).
    Returns (d_model, height, width) float32.
    """
    n_odd = d_model // 2
    div_term = jnp.exp(
        jnp.arange(0, d_model, 2, dtype=jnp.float32) * (-math.log(10000.0) / d_model)
    )  # (ceil(d_model/2),)
    h = jnp.arange(height, dtype=jnp.float32)
    w = jnp.arange(width, dtype=jnp.float32)

    sin_h = jnp.sin(div_term[:, None] * h[None, :])          # (n_even, H)
    sin_w = jnp.sin(div_term[:, None] * w[None, :])          # (n_even, W)
    cos_h = jnp.cos(div_term[:n_odd, None] * h[None, :])     # (n_odd, H)
    cos_w = jnp.cos(div_term[:n_odd, None] * w[None, :])     # (n_odd, W)

    pe_even = sin_h[:, :, None] + sin_w[:, None, :]           # (n_even, H, W)
    pe_odd = cos_h[:, :, None] + cos_w[:, None, :]            # (n_odd, H, W)

    pe = jnp.zeros((d_model, height, width), dtype=jnp.float32)
    pe = pe.at[0::2].set(pe_even)
    pe = pe.at[1::2].set(pe_odd)
    return pe


def _add_kernel(x_ref, pe_ref, o_ref):
    # x_ref: (b_tile, C, lane_tile), pe_ref: (C, lane_tile).
    # Broadcast add over the leading (batch) dim; promotion (e.g. bf16 + f32)
    # happens in the add, only the store casts to the output dtype.
    o_ref[...] = (x_ref[...] + pe_ref[...][None, :, :]).astype(o_ref.dtype)


def _choose_tiles(B: int, C: int, L: int, x_itemsize: int, pe_itemsize: int,
                  target_block_bytes: int):
    """Pick (b_tile, lane_tile) so the x block is ~target_block_bytes.

    lane_tile is the full L (always legal) or the largest multiple of 128 within
    the byte budget (partial boundary blocks handled via a cdiv grid).  b_tile
    then fills the remaining budget, capped at B.
    """
    bytes_per_lane = C * max(x_itemsize, pe_itemsize)
    budget_lanes = max(128, (target_block_bytes // max(1, bytes_per_lane)) // 128 * 128)
    lane_tile = L if L <= budget_lanes else budget_lanes

    x_block_bytes = C * lane_tile * x_itemsize
    b_tile = int(max(1, min(B, target_block_bytes // max(1, x_block_bytes))))
    return b_tile, lane_tile


def positional_encoding_2d(x: jnp.ndarray, pe: jnp.ndarray, *,
                           target_block_bytes: int = 4 << 20,
                           donate_x: bool = False) -> jnp.ndarray:
    """x: (B, C, H, W) NCHW; pe: (C, H, W). Returns x + pe broadcast over batch."""
    B, C, H, W = x.shape
    assert pe.shape == (C, H, W), f"pe shape {pe.shape} != {(C, H, W)}"
    L = H * W
    out_dtype = jnp.result_type(x.dtype, pe.dtype)

    x3 = x.reshape(B, C, L)
    pe2 = pe.reshape(C, L)          # keep pe in its native (f32) dtype

    b_tile, lane_tile = _choose_tiles(
        B, C, L,
        jnp.dtype(x.dtype).itemsize, jnp.dtype(pe.dtype).itemsize,
        target_block_bytes)
    n_l = pl.cdiv(L, lane_tile)
    n_b = pl.cdiv(B, b_tile)

    io_aliases = {0: 0} if (donate_x and out_dtype == x.dtype) else {}

    out = pl.pallas_call(
        _add_kernel,
        out_shape=jax.ShapeDtypeStruct((B, C, L), out_dtype),
        grid_spec=pltpu.PrefetchScalarGridSpec(
            num_scalar_prefetch=0,
            # Lane axis OUTER, batch axis INNER: pe's block index ignores b, so
            # its resident tile is reused across the inner batch steps (do not
            # reorder this grid without also rethinking pe traffic).
            grid=(n_l, n_b),
            in_specs=[
                pl.BlockSpec((b_tile, C, lane_tile), lambda l, b: (b, 0, l)),
                pl.BlockSpec((C, lane_tile), lambda l, b: (0, l)),
            ],
            out_specs=pl.BlockSpec((b_tile, C, lane_tile), lambda l, b: (b, 0, l)),
        ),
        compiler_params=pltpu.CompilerParams(
            dimension_semantics=("parallel", "parallel"),
            vmem_limit_bytes=48 * 1024 * 1024,
        ),
        input_output_aliases=io_aliases,
    )(x3, pe2)
    return out.reshape(B, C, H, W)


if __name__ == "__main__":
    key = jax.random.PRNGKey(0)
    k1, k2 = jax.random.split(key)

    # Small shapes consistent with the module: batch=2, d_model=4, height=width=16.
    B, C, H, W = 2, 4, 16, 16
    x = jax.random.normal(k1, (B, C, H, W), dtype=jnp.float32)
    pe = make_pe(C, H, W)
    ref = x + pe[None, :, :, :]

    out = jax.block_until_ready(positional_encoding_2d(x, pe))
    assert out.shape == (B, C, H, W) and out.dtype == jnp.float32
    assert jnp.allclose(out, ref, atol=1e-6), "f32 mismatch vs reference"

    # bf16 activations: add runs in f32 (PyTorch-style bf16+f32 promotion),
    # output dtype follows the promotion (f32).
    x_bf16 = x.astype(jnp.bfloat16)
    ref_bf16 = x_bf16 + pe[None, :, :, :]
    out_bf16 = jax.block_until_ready(positional_encoding_2d(x_bf16, pe))
    assert out_bf16.dtype == ref_bf16.dtype
    assert jnp.allclose(out_bf16, ref_bf16, atol=1e-6), "bf16 mismatch vs reference"

    # Multi-step grid with a partial final lane block (L=144, lane_tile=128) and
    # b_tile=1, forced via a tiny block budget — exercises the cdiv/boundary path.
    B2, H2, W2 = 3, 12, 12
    x2 = jax.random.normal(k2, (B2, C, H2, W2), dtype=jnp.float32)
    pe_b = make_pe(C, H2, W2)
    out2 = jax.block_until_ready(
        positional_encoding_2d(x2, pe_b, target_block_bytes=2048))
    assert jnp.allclose(out2, x2 + pe_b[None], atol=1e-6), "tiled-path mismatch"

    print("KERNEL_OK")
</pallas_src>

<mosaic_0001>
module attributes {stable_mosaic.version = 11 : i64} {
  func.func @_add_kernel(%arg0: i32, %arg1: i32, %arg2: memref<2x4x256xf32, #tpu.memory_space<vmem>>, %arg3: memref<4x256xf32, #tpu.memory_space<vmem>>, %arg4: memref<2x4x256xf32, #tpu.memory_space<vmem>>) attributes {dimension_semantics = [#tpu.dimension_semantics<parallel>, #tpu.dimension_semantics<parallel>], iteration_bounds = array<i64: 1, 1>, scalar_prefetch = 0 : i64, scratch_operands = 0 : i64, tpu.core_type = #tpu.core_type<tc>, window_params = [{transform_indices = @transform_0, window_bounds = array<i64: 2, 4, 256>}, {transform_indices = @transform_1, window_bounds = array<i64: 4, 256>}, {transform_indices = @transform_2, window_bounds = array<i64: 2, 4, 256>}]} {
    %c0 = arith.constant 0 : index
    %c0_0 = arith.constant 0 : index
    %c0_1 = arith.constant 0 : index
    %0 = vector.load %arg2[%c0, %c0_0, %c0_1] : memref<2x4x256xf32, #tpu.memory_space<vmem>>, vector<2x4x256xf32>
    %c0_2 = arith.constant 0 : index
    %c0_3 = arith.constant 0 : index
    %1 = vector.load %arg3[%c0_2, %c0_3] : memref<4x256xf32, #tpu.memory_space<vmem>>, vector<4x256xf32>
    %2 = vector.shape_cast %1 : vector<4x256xf32> to vector<1x4x256xf32>
    %3 = vector.broadcast %2 : vector<1x4x256xf32> to vector<2x4x256xf32>
    %4 = arith.addf %0, %3 : vector<2x4x256xf32>
    %c0_4 = arith.constant 0 : index
    %c0_5 = arith.constant 0 : index
    %c0_6 = arith.constant 0 : index
    %5 = vector.load %arg4[%c0_4, %c0_5, %c0_6] : memref<2x4x256xf32, #tpu.memory_space<vmem>>, vector<2x4x256xf32>
    tpu.vector_store %arg4[%c0_4, %c0_5, %c0_6], %4 {strides = array<i32>} : memref<2x4x256xf32, #tpu.memory_space<vmem>>, vector<2x4x256xf32>,
    return
  }
  func.func @transform_0(%arg0: i32, %arg1: i32) -> (i32, i32, i32) {
    %c0_i32 = arith.constant 0 : i32
    %c0_i32_0 = arith.constant 0 : i32
    return %arg1, %c0_i32, %arg0 : i32, i32, i32
  }
  func.func @transform_1(%arg0: i32, %arg1: i32) -> (i32, i32) {
    %c0_i32 = arith.constant 0 : i32
    %c0_i32_0 = arith.constant 0 : i32
    return %c0_i32, %arg0 : i32, i32
  }
  func.func @transform_2(%arg0: i32, %arg1: i32) -> (i32, i32, i32) {
    %c0_i32 = arith.constant 0 : i32
    %c0_i32_0 = arith.constant 0 : i32
    return %arg1, %c0_i32, %arg0 : i32, i32, i32
  }
}

</mosaic_0001>

<llo_original>
// kernel: tpu_custom_call.1
$region0: #{tpu_custom_call.1}
  #allocation0 [shape = 'u32[]', space=smem, size = 0x4, offset = 0x4, fixed_abs, tag = 'smem constant byte address 0x4 - core index']
  #allocation1 [shape = 'u32[144,128]{1,0:T(1,128)}', space=vmem, size = 0x12000, scoped, tag = 'internal scratch']
  %s0 = inlined_call_operand.hbm [shape: f32[2,4,256], index: 0, kind: input, shape index: {}]
  %s1 = inlined_call_operand.hbm [shape: f32[4,256], index: 1, kind: input, shape index: {}]
  %s2 = inlined_call_operand.hbm [shape: f32[2,4,256], index: 2, kind: output, shape index: {}]
  %s3 = sld [smem:[#allocation0]]
  $region26: #{tpu_custom_call.1} parent=0
    _
  %s5 = ssub.s32 1, %s3
  %s6 = scalar_select 0, %s5, %s3
  $region1: #{tpu_custom_call.1} parent=0
    #allocation2 [shape = 'u8[8192]{0}', space=vmem, size = 0x2000, scoped, tag = 'input window, operand 0, single buffered']
    #allocation3 [shape = 's32[1]{0}', space=sflag, size = 0x4, scoped, tag = 'scoped memory for tpu_custom_call.1']
    #allocation4 [shape = 's32[1]{0}', space=sflag, size = 0x4, scoped, tag = 'scoped memory for tpu_custom_call.1']
    #allocation5 [shape = 'u8[4096]{0}', space=vmem, size = 0x1000, scoped, tag = 'input window, operand 1, single buffered']
    #allocation6 [shape = 's32[1]{0}', space=sflag, size = 0x4, scoped, tag = 'scoped memory for tpu_custom_call.1']
    #allocation7 [shape = 'u8[8192]{0}', space=vmem, size = 0x2000, scoped, tag = 'output window, operand 0, single buffered']
    %7 = vsyncpa [#allocation3], 0
    %8 = vsyncpa [#allocation6], 0
    %9 = vsyncpa [#allocation4], 0
    // Predicated region
    $region2: #{tpu_custom_call.1} parent=1 // pred_check
      _
    $region3: #{tpu_custom_call.1} parent=1 // pred_check_branch
      %11 = sbr.rel (0) target = $region5
    $region4: #{tpu_custom_call.1} parent=1 // pred_region
      %s13 = ssub.s32 256, 256
      %14 = vsyncadd [#allocation3], %s13
      %s15 = sshll.u32 [#allocation2], 4
      %s16 = int_to_ptr.vmem [resolvable:$true] %s15
      %21 = dma.hbm_to_vmem [thread:$0]  %s0, 256, %s16, [#allocation3], 128, 128, 8
    $region5: #{tpu_custom_call.1} parent=1 // pred_fallthru
      _
    // Predicated region
    $region6: #{tpu_custom_call.1} parent=1 // pred_check
      _
    $region7: #{tpu_custom_call.1} parent=1 // pred_check_branch
      %23 = sbr.rel (0) target = $region9
    $region8: #{tpu_custom_call.1} parent=1 // pred_region
      %s25 = ssub.s32 128, 128
      %26 = vsyncadd [#allocation6], %s25
      %s28 = sshll.u32 [#allocation5], 4
      %s29 = int_to_ptr.vmem [resolvable:$true] %s28
      %31 = dma.hbm_to_vmem [thread:$0]  %s1, 128, %s29, [#allocation6]
    $region9: #{tpu_custom_call.1} parent=1 // pred_fallthru
      _
    // Predicated region
    $region10: #{tpu_custom_call.1} parent=1 // pred_check
      _
    $region11: #{tpu_custom_call.1} parent=1 // pred_check_branch
      %33 = sbr.rel (0) target = $region13
    $region12: #{tpu_custom_call.1} parent=1 // pred_region
      %34 = dma.done [#allocation3], 256
    $region13: #{tpu_custom_call.1} parent=1 // pred_fallthru
      _
    // Predicated region
    $region14: #{tpu_custom_call.1} parent=1 // pred_check
      _
    $region15: #{tpu_custom_call.1} parent=1 // pred_check_branch
      %36 = sbr.rel (0) target = $region17
    $region16: #{tpu_custom_call.1} parent=1 // pred_region
      %37 = dma.done [#allocation6], 128
    $region17: #{tpu_custom_call.1} parent=1 // pred_fallthru
      _
    %v38 = vld [vmem:[#allocation2] sm:$0xff]
    %v39 = vld [vmem:[#allocation2 + $0x8] sm:$0xff]
    %v40 = vld [vmem:[#allocation5] sm:$0xff]
    %v41 = vadd.f32 %v38, %v40
    %v42 = vadd.f32 %v39, %v40
    %43 = vst [vmem:[#allocation7] sm:$0xff] %v41
    %44 = vst [vmem:[#allocation7 + $0x8] sm:$0xff] %v42
    // Predicated region
    $region18: #{tpu_custom_call.1} parent=1 // pred_check
      _
    $region19: #{tpu_custom_call.1} parent=1 // pred_check_branch
      %46 = sbr.rel (0) target = $region21
    $region20: #{tpu_custom_call.1} parent=1 // pred_region
      %s48 = ssub.s32 256, 256
      %49 = vsyncadd [#allocation4], %s48
      %s50 = sshll.u32 [#allocation7], 4
      %s51 = int_to_ptr.vmem [resolvable:$true] %s50
      %56 = dma.vmem_to_hbm [thread:$0]  %s51, 256, %s2, [#allocation4], 128, 128, 8
    $region21: #{tpu_custom_call.1} parent=1 // pred_fallthru
      _
    // Predicated region
    $region22: #{tpu_custom_call.1} parent=1 // pred_check
      _
    $region23: #{tpu_custom_call.1} parent=1 // pred_check_branch
      %58 = sbr.rel (0) target = $region25
    $region24: #{tpu_custom_call.1} parent=1 // pred_region
      %59 = dma.done [#allocation4], 256
    $region25: #{tpu_custom_call.1} parent=1 // pred_fallthru
      _
    %60 = vsyncpa [#allocation3], 1
    %61 = vsyncpa [#allocation6], 1
    %62 = vsyncpa [#allocation4], 1

</llo_original>
